<compile_context>
chip_gen: v6e
topology: v6e:2x2x1
jax: 0.10.0
libtpu: 0.0.40
codegen_flags: <defaults>
</compile_context>

<pallas_src>
import functools

import jax
import jax.numpy as jnp
from jax import lax
from jax.experimental import pallas as pl
from jax.experimental.pallas import tpu as pltpu


def _round_up(a, b):
    return -(-a // b) * b


def _gem_kernel(x_ref, o_ref, *scratch, p, inv_hw, hw, blk_w, n_slices,
                rows_per_strip, n_strips, need_mask, single_k):
    """x_ref: (TM, THW) block.  o_ref: (TM, 1).  scratch: optional (TM,1) f32."""
    RS = rows_per_strip
    k = pl.program_id(1)
    k_off = k * blk_w
    root = 1.0 / p

    # Hoisted once (JAX does not CSE broadcast_in_dim).
    lane = lax.broadcasted_iota(jnp.int32, (RS, 128), 1) if need_mask else None

    def slice_pow(r0, s):
        c0 = s * 128
        if not isinstance(c0, int):
            c0 = pl.multiple_of(c0, 128)
        xs = x_ref[pl.ds(r0, RS), pl.ds(c0, 128)].astype(jnp.float32)
        if need_mask:
            # Zero out-of-range lanes BEFORE the power so overhang garbage
            # (Pallas does not bounds-check padded block reads) is inert.
            xs = jnp.where(lane < (hw - k_off - c0), xs, 0.0)
        if isinstance(p, int):
            return lax.integer_pow(xs, p)      # VPU multiplies, not EUP exp/log
        return xs ** p

    def strip_row_sum(r0):
        # Fold all 128-lane slices into a lane-dense (RS,128) register
        # accumulator with VPU adds; ONE cross-lane reduce per vreg at the end.
        if n_slices == 1:
            acc = slice_pow(r0, 0)
        else:
            acc = lax.fori_loop(
                0, n_slices,
                lambda s, a: a + slice_pow(r0, s),
                jnp.zeros((RS, 128), jnp.float32),
                unroll=min(n_slices, 8))
        return jnp.sum(acc, axis=-1, keepdims=True)        # (RS, 1)

    if single_k:
        # Whole spatial extent in one tile: finalize directly, no scratch.
        def strip_body(si, carry):
            r0 = si * RS
            if not isinstance(r0, int):
                r0 = pl.multiple_of(r0, 8)
            row = strip_row_sum(r0)
            o_ref[pl.ds(r0, RS), :] = ((row * inv_hw) ** root).astype(o_ref.dtype)
            return carry

        if n_strips == 1:
            strip_body(0, 0)
        else:
            lax.fori_loop(0, n_strips, strip_body, 0, unroll=min(n_strips, 8))
    else:
        acc_ref = scratch[0]

        @pl.when(k == 0)
        def _init():
            acc_ref[...] = jnp.zeros_like(acc_ref)

        def strip_body(si, carry):
            r0 = si * RS
            if not isinstance(r0, int):
                r0 = pl.multiple_of(r0, 8)
            acc_ref[pl.ds(r0, RS), :] += strip_row_sum(r0)
            return carry

        if n_strips == 1:
            strip_body(0, 0)
        else:
            lax.fori_loop(0, n_strips, strip_body, 0, unroll=min(n_strips, 8))

        @pl.when(k == pl.num_programs(1) - 1)
        def _fin():
            pooled = acc_ref[...] * inv_hw                 # mean over true H*W
            o_ref[...] = (pooled ** root).astype(o_ref.dtype)


def gem_pooling(x, p=3, *, target_block_bytes=8 * 1024 * 1024,
                max_spatial_tile=8192):
    """x: (N, C, H, W) -> (N, C, 1, 1), matching GEMPooling.forward."""
    N, C, H, W = x.shape
    hw = H * W
    R = N * C
    x2 = x.reshape(R, hw)
    itemsize = jnp.dtype(x.dtype).itemsize

    # --- Spatial tiling: full extent if it fits, else balanced 128-mult tiles.
    max_spatial_tile = max(128, (max_spatial_tile // 128) * 128)
    thw_cap = min(max_spatial_tile, _round_up(hw, 128))
    n_k = pl.cdiv(hw, thw_cap)
    THW = _round_up(pl.cdiv(hw, n_k), 128)      # balance tiles; still <= cap
    n_k = pl.cdiv(hw, THW)
    need_mask = (n_k * THW != hw)               # overhang lanes exist
    single_k = (n_k == 1)

    # --- Row tiling by byte budget (amortizes the ~0.35us/step overhead).
    tm_target = max(8, _round_up(target_block_bytes // (THW * itemsize), 8))
    TM = min(_round_up(R, 8), tm_target)
    # Give both v7x TensorCores work on the "parallel" row axis if rows allow.
    if pl.cdiv(R, TM) < 2 and R >= 16:
        TM = max(8, _round_up(pl.cdiv(R, 2), 8))
    n_i = pl.cdiv(R, TM)

    # In-kernel row strip: bounds the (RS,128) f32 register accumulator
    # (RS<=128 -> <=16 vregs carried through the fori_loop).
    RS = next(s for s in (128, 64, 32, 16, 8) if TM % s == 0)
    n_strips = TM // RS
    n_slices = THW // 128

    p_static = int(p) if float(p).is_integer() else float(p)

    kernel = functools.partial(
        _gem_kernel, p=p_static, inv_hw=1.0 / hw, hw=hw, blk_w=THW,
        n_slices=n_slices, rows_per_strip=RS, n_strips=n_strips,
        need_mask=need_mask, single_k=single_k)

    scratch = [] if single_k else [pltpu.VMEM((TM, 1), jnp.float32)]

    # --- VMEM limit from the real footprint (leave headroom, esp. on v7x).
    in_blk = TM * THW * itemsize
    out_blk = TM * 128 * itemsize               # (TM,1) block, lane-padded
    acc_blk = 0 if single_k else TM * 128 * 4
    footprint = 2 * in_blk + 2 * out_blk + acc_blk
    vmem_limit = int(min(max(footprint * 1.3 + (1 << 20), 8 * 1024 * 1024),
                         40 * 1024 * 1024))

    if isinstance(p_static, int):
        flops = max(p_static, 1) * R * hw
        transcendentals = 2 * R                  # only the final 1/p root
    else:
        flops = 4 * R * hw
        transcendentals = 2 * R * hw + 2 * R
    cost = pl.CostEstimate(
        flops=int(flops),
        transcendentals=int(transcendentals),
        bytes_accessed=int(R * hw * itemsize + R * itemsize))

    out = pl.pallas_call(
        kernel,
        out_shape=jax.ShapeDtypeStruct((R, 1), x.dtype),
        grid=(n_i, n_k),
        in_specs=[pl.BlockSpec((TM, THW), lambda i, k: (i, k))],
        out_specs=pl.BlockSpec((TM, 1), lambda i, k: (i, 0)),
        scratch_shapes=scratch,
        compiler_params=pltpu.CompilerParams(
            dimension_semantics=("parallel", "arbitrary"),
            vmem_limit_bytes=vmem_limit),
        cost_estimate=cost,
    )(x2)

    return out.reshape(N, C, 1, 1)


def gem_pooling_ref(x, p=3):
    # Pure-JAX reference mirroring the PyTorch forward.
    N, C = x.shape[0], x.shape[1]
    flat = x.reshape(N, C, -1).astype(jnp.float32)
    out = jnp.mean(flat ** p, axis=2) ** (1.0 / p)
    return out[:, :, None, None].astype(x.dtype)


if __name__ == "__main__":
    key = jax.random.PRNGKey(0)

    # Primary test: shapes consistent with the module's intended use.
    N, C, H, W = 2, 4, 16, 16
    x = jax.random.uniform(key, (N, C, H, W), dtype=jnp.float32)
    out = jax.block_until_ready(gem_pooling(x, p=3))
    ref = gem_pooling_ref(x, p=3)
    assert out.shape == (N, C, 1, 1)
    assert jnp.allclose(out, ref, atol=1e-5, rtol=1e-5)

    # Ragged rows + ragged spatial extent: in-kernel lane mask, clipped row
    # writes, no HBM padding round-trip.
    x2 = jax.random.uniform(jax.random.PRNGKey(1), (3, 5, 7, 9), dtype=jnp.float32)
    out2 = jax.block_until_ready(gem_pooling(x2, p=3))
    assert out2.shape == (3, 5, 1, 1)
    assert jnp.allclose(out2, gem_pooling_ref(x2, p=3), atol=1e-5, rtol=1e-5)

    # Tiled + masked spatial reduction path (multi-k accumulator scratch).
    x3 = jax.random.uniform(jax.random.PRNGKey(2), (2, 3, 10, 13), dtype=jnp.float32)
    out3 = jax.block_until_ready(gem_pooling(x3, p=3, max_spatial_tile=128))
    assert jnp.allclose(out3, gem_pooling_ref(x3, p=3), atol=1e-5, rtol=1e-5)

    # Typical post-conv GEM shape (7x7 feature map) + 2-block parallel row axis.
    x4 = jax.random.uniform(jax.random.PRNGKey(3), (2, 64, 7, 7), dtype=jnp.float32)
    out4 = jax.block_until_ready(gem_pooling(x4, p=3))
    assert jnp.allclose(out4, gem_pooling_ref(x4, p=3), atol=1e-5, rtol=1e-5)

    print("KERNEL_OK")
</pallas_src>

<mosaic_0001>
module attributes {stable_mosaic.version = 11 : i64} {
  func.func @_gem_kernel(%arg0: i32, %arg1: i32, %arg2: memref<8x256xf32, #tpu.memory_space<vmem>>, %arg3: memref<8x1xf32, #tpu.memory_space<vmem>>) attributes {dimension_semantics = [#tpu.dimension_semantics<parallel>, #tpu.dimension_semantics<arbitrary>], iteration_bounds = array<i64: 1, 1>, scalar_prefetch = 0 : i64, scratch_operands = 0 : i64, tpu.core_type = #tpu.core_type<tc>, window_params = [{transform_indices = @transform_0, window_bounds = array<i64: 8, 256>}, {transform_indices = @transform_1, window_bounds = array<i64: 8, 1>}]} {
    %cst = arith.constant 0.000000e+00 : f32
    %0 = vector.broadcast %cst : f32 to vector<8x128xf32>
    %c0_i32 = arith.constant 0 : i32
    %c128_i32 = arith.constant 128 : i32
    %1 = arith.muli %c0_i32, %c128_i32 : i32
    %2 = tpu.assume_multiple %1, 128 : i32
    %c0 = arith.constant 0 : index
    %3 = arith.index_cast %2 : i32 to index
    %4 = vector.load %arg2[%c0, %3] : memref<8x256xf32, #tpu.memory_space<vmem>>, vector<8x128xf32>
    %5 = arith.mulf %4, %4 : vector<8x128xf32>
    %6 = arith.mulf %4, %5 : vector<8x128xf32>
    %7 = arith.addf %0, %6 : vector<8x128xf32>
    %c1_i32 = arith.constant 1 : i32
    %c128_i32_0 = arith.constant 128 : i32
    %8 = arith.muli %c1_i32, %c128_i32_0 : i32
    %9 = tpu.assume_multiple %8, 128 : i32
    %c0_1 = arith.constant 0 : index
    %10 = arith.index_cast %9 : i32 to index
    %11 = vector.load %arg2[%c0_1, %10] : memref<8x256xf32, #tpu.memory_space<vmem>>, vector<8x128xf32>
    %12 = arith.mulf %11, %11 : vector<8x128xf32>
    %13 = arith.mulf %11, %12 : vector<8x128xf32>
    %14 = arith.addf %7, %13 : vector<8x128xf32>
    %c2_i32 = arith.constant 2 : i32
    %cst_2 = arith.constant dense<0.000000e+00> : vector<8xf32>
    %15 = vector.multi_reduction <add>, %14, %cst_2 [1] : vector<8x128xf32> to vector<8xf32>
    %16 = vector.shape_cast %15 : vector<8xf32> to vector<8x1xf32>
    %cst_3 = arith.constant 3.906250e-03 : f32
    %17 = vector.broadcast %cst_3 : f32 to vector<8x1xf32>
    %18 = arith.mulf %16, %17 : vector<8x1xf32>
    %cst_4 = arith.constant 0.333333343 : f32
    %19 = vector.broadcast %cst_4 : f32 to vector<8x1xf32>
    %20 = math.powf %18, %19 : vector<8x1xf32>
    %c0_5 = arith.constant 0 : index
    %c0_6 = arith.constant 0 : index
    %21 = vector.load %arg3[%c0_5, %c0_6] : memref<8x1xf32, #tpu.memory_space<vmem>>, vector<8x1xf32>
    tpu.vector_store %arg3[%c0_5, %c0_6], %20 {strides = array<i32>} : memref<8x1xf32, #tpu.memory_space<vmem>>, vector<8x1xf32>,
    return
  }
  func.func @transform_0(%arg0: i32, %arg1: i32) -> (i32, i32) {
    %c0_i32 = arith.constant 0 : i32
    return %arg0, %arg1 : i32, i32
  }
  func.func @transform_1(%arg0: i32, %arg1: i32) -> (i32, i32) {
    %c0_i32 = arith.constant 0 : i32
    %c0_i32_0 = arith.constant 0 : i32
    return %arg0, %c0_i32 : i32, i32
  }
}

</mosaic_0001>

<llo_original>
// kernel: tpu_custom_call.1
$region0: #{tpu_custom_call.1}
  #allocation0 [shape = 'u32[]', space=smem, size = 0x4, offset = 0x4, fixed_abs, tag = 'smem constant byte address 0x4 - core index']
  #allocation1 [shape = 'u32[144,128]{1,0:T(1,128)}', space=vmem, size = 0x12000, scoped, tag = 'internal scratch']
  %s0 = inlined_call_operand.hbm [shape: f32[8,256], index: 0, kind: input, shape index: {}]
  %s1 = inlined_call_operand.vmem [shape: f32[8,1], index: 1, kind: output, shape index: {}]
  %s2 = sld [smem:[#allocation0]]
  $region18: #{tpu_custom_call.1} parent=0
    _
  %s4 = ssub.s32 1, %s2
  %s5 = scalar_select 0, %s4, %s2
  $region1: #{tpu_custom_call.1} parent=0
    #allocation2 [shape = 'u8[8192]{0}', space=vmem, size = 0x2000, scoped, tag = 'input window, operand 0, single buffered']
    #allocation3 [shape = 's32[1]{0}', space=sflag, size = 0x4, scoped, tag = 'scoped memory for tpu_custom_call.1']
    %6 = vsyncpa [#allocation3], 0
    // Predicated region
    $region2: #{tpu_custom_call.1} parent=1 // pred_check
      _
    $region3: #{tpu_custom_call.1} parent=1 // pred_check_branch
      %8 = sbr.rel (0) target = $region5
    $region4: #{tpu_custom_call.1} parent=1 // pred_region
      %s10 = ssub.s32 256, 256
      %11 = vsyncadd [#allocation3], %s10
      %s13 = sshll.u32 [#allocation2], 4
      %s14 = int_to_ptr.vmem [resolvable:$true] %s13
      %16 = dma.hbm_to_vmem [thread:$0]  %s0, 256, %s14, [#allocation3]
    $region5: #{tpu_custom_call.1} parent=1 // pred_fallthru
      _
    // Predicated region
    $region6: #{tpu_custom_call.1} parent=1 // pred_check
      _
    $region7: #{tpu_custom_call.1} parent=1 // pred_check_branch
      %18 = sbr.rel (0) target = $region9
    $region8: #{tpu_custom_call.1} parent=1 // pred_region
      %19 = dma.done [#allocation3], 256
    $region9: #{tpu_custom_call.1} parent=1 // pred_fallthru
      _
    %v20 = vld [vmem:[#allocation2] sm:$0xff]
    %v21 = vmul.f32 %v20, %v20
    %v22 = vmul.f32 %v20, %v21
    %v23 = vadd.f32 %v22, 0.0
    %s24 = scalar_lea.vmem [#allocation2], 8
    %v25 = vld [vmem:[%s24] sm:$0xff]
    %v26 = vmul.f32 %v25, %v25
    %v27 = vmul.f32 %v25, %v26
    %v28 = vadd.f32 %v23, %v27
    %29 = vadd.xlane.f32.xlu0 %v28
    %v30 = vpop.xlane.xlu0 %29
    %v31 = vmul.f32 %v30, 0.00390625
    %v32 = vpow.f32 %v31, 0.33333334
    %vm33 = vcmask 7168
    %34 = vst.msk [vmem:[%s1] sm:$0xff] %vm33, %v32
    // Predicated region
    $region10: #{tpu_custom_call.1} parent=1 // pred_check
      _
    $region11: #{tpu_custom_call.1} parent=1 // pred_check_branch
      %36 = sbr.rel (0) target = $region13
    $region12: #{tpu_custom_call.1} parent=1 // pred_region
      _
    $region13: #{tpu_custom_call.1} parent=1 // pred_fallthru
      _
    // Predicated region
    $region14: #{tpu_custom_call.1} parent=1 // pred_check
      _
    $region15: #{tpu_custom_call.1} parent=1 // pred_check_branch
      %38 = sbr.rel (0) target = $region17
    $region16: #{tpu_custom_call.1} parent=1 // pred_region
      _
    $region17: #{tpu_custom_call.1} parent=1 // pred_fallthru
      _
    %39 = vsyncpa [#allocation3], 1

</llo_original>
